<compile_context>
chip_gen: v7x
topology: tpu7x:2x2x1
jax: 0.10.0
libtpu: 0.0.40
codegen_flags: <defaults>
</compile_context>

<pallas_src>
import math
import functools

import jax
import jax.numpy as jnp
from jax import lax
from jax.experimental import pallas as pl
from jax.experimental.pallas import tpu as pltpu

# ---------------- model configuration (small, consistent with the module) ----
INPUT_SHAPE = (1, 16, 16)          # flattened -> 256 input features
INPUT_SIZE = 1 * 16 * 16
HT_SIZE = 128                      # hypertensor layer width
HT_ORDER = 2                       # hyperoperation order (see NOTE above)
FC_SIZES = (128, 128)              # two FC blocks
NUM_CLASSES = 10
OUT_PAD = 128                      # output layer padded to a full lane group
BATCH = 2

BN_EPS = 1e-5
BN_INV = 1.0 / math.sqrt(1.0 + BN_EPS)                 # eval-mode BN with init stats
HT_WEIGHT_SCALE = 0.01 / (2.0 ** (HT_ORDER - 1))       # weight init scale
HT_SCALE_PARAM = 0.01 / (2.0 ** (HT_ORDER - 1))        # `scale` parameter at init
HYPER_PRESCALE = 1.0 / (2.0 ** (HT_ORDER - 1))         # apply_hyperoperation scaling
# tanh(z) * scale -> * prescale -> square -> * BN_INV  collapses to:
HT_POST_CONST = (HT_SCALE_PARAM * HYPER_PRESCALE) ** 2 * BN_INV
SQRT_2_OVER_PI = math.sqrt(2.0 / math.pi)
INV_SQRT_2 = 1.0 / math.sqrt(2.0)

# bias-slab offsets (all at 128-lane boundaries -> free slices)
_B_HT_END = 2 * HT_SIZE                       # 256
_B_F1_END = _B_HT_END + FC_SIZES[0]           # 384
_B_F2_END = _B_F1_END + FC_SIZES[1]           # 512
_B_OUT_END = _B_F2_END + OUT_PAD              # 640


# ---------------- in-kernel helpers ------------------------------------------
def _gelu_tanh(x):
    # ActivationFunctions.gelu (tanh approximation) — lowers to the EUP.
    return 0.5 * x * (1.0 + jnp.tanh(SQRT_2_OVER_PI * (x + 0.044715 * x * x * x)))


def _gelu_exact(x):
    # nn.GELU() default (erf-based); used only in the pure-JAX module reference.
    return 0.5 * x * (1.0 + lax.erf(x * INV_SQRT_2))


# ---------------- the fused network kernel -----------------------------------
def _network_kernel(x_ref, w_ht_ref, w_fc_ref, b_ref, out_ref):
    # Activations cast to bf16 right before each MXU dot (tiny pack work);
    # weights stay bf16; accumulation is f32 via preferred_element_type.
    x = x_ref[...].astype(jnp.bfloat16)                               # (B, 256) bf16

    b_ht = b_ref[:, 0:_B_HT_END]                                      # (1, 256) f32
    bf1 = b_ref[:, _B_HT_END:_B_F1_END]                               # (1, 128) f32
    bf2 = b_ref[:, _B_F1_END:_B_F2_END]                               # (1, 128) f32
    bo = b_ref[:, _B_F2_END:_B_OUT_END]                               # (1, 128) f32 (-1e30 pads)

    # ---- HypertensorLayer(256 -> 128) + residual projection, fused matmul
    # columns [0:128)   = hypertensor linear with BN_INV pre-folded
    # columns [128:256) = residual projection Linear(256 -> 128)
    y = jnp.dot(x, w_ht_ref[...], preferred_element_type=jnp.float32) + b_ht
    z = y[:, :HT_SIZE]           # linear + input_bn (eval, folded)
    res = y[:, HT_SIZE:]         # residual path
    t = jnp.tanh(z)
    # tanh*scale, *prescale, square (order-2 hyperop), output_bn -> one constant
    z = _gelu_tanh(t * t * HT_POST_CONST + res)

    # ---- FC block 1: Linear -> BN (folded) -> GELU -> Dropout(eval: identity)
    z = _gelu_tanh(
        jnp.dot(z.astype(jnp.bfloat16), w_fc_ref[:, 0:FC_SIZES[0]],
                preferred_element_type=jnp.float32) + bf1)

    # ---- FC block 2
    z = _gelu_tanh(
        jnp.dot(z.astype(jnp.bfloat16), w_fc_ref[:, FC_SIZES[0]:FC_SIZES[0] + FC_SIZES[1]],
                preferred_element_type=jnp.float32) + bf2)

    # ---- output layer (padded to 128 lanes) + log_softmax(dim=1)
    logits = jnp.dot(z.astype(jnp.bfloat16),
                     w_fc_ref[:, FC_SIZES[0] + FC_SIZES[1]:],
                     preferred_element_type=jnp.float32) + bo
    m = jnp.max(logits, axis=-1, keepdims=True)
    lse = m + jnp.log(jnp.sum(jnp.exp(logits - m), axis=-1, keepdims=True))
    out_ref[...] = logits - lse


# ---------------- wrapper -----------------------------------------------------
@jax.jit
def hypertensor_forward(x, params):
    batch = x.shape[0]
    xf = x.reshape(batch, -1).astype(jnp.float32)       # x.view(B, -1)

    inputs = (xf, params["w_ht"], params["w_fc"], params["b_all"])

    flops = 2 * batch * (INPUT_SIZE * 2 * HT_SIZE + 3 * 128 * 128)
    transcendentals = batch * (5 * 128 + 128 + 1)
    weight_bytes = 2 * (INPUT_SIZE * 2 * HT_SIZE + 128 * (FC_SIZES[0] + FC_SIZES[1] + OUT_PAD))
    bias_bytes = 4 * _B_OUT_END
    act_bytes = 4 * batch * (INPUT_SIZE + OUT_PAD)
    cost = pl.CostEstimate(flops=flops, transcendentals=transcendentals,
                           bytes_accessed=weight_bytes + bias_bytes + act_bytes)

    vmem = pl.BlockSpec(memory_space=pltpu.MemorySpace.VMEM)
    out_pad = pl.pallas_call(
        _network_kernel,
        out_shape=jax.ShapeDtypeStruct((batch, OUT_PAD), jnp.float32),
        in_specs=[vmem] * len(inputs),
        out_specs=vmem,
        cost_estimate=cost,
    )(*inputs)
    return out_pad[:, :NUM_CLASSES]


# ---------------- deterministic parameter init (PyTorch-style, raw f32) -------
def init_raw_params(key):
    ks = jax.random.split(key, 5)
    f32 = jnp.float32
    # HypertensorLayer weight: randn(out, in) * (0.01 / 2**(order-1)), bias = 0
    w1 = jax.random.normal(ks[0], (HT_SIZE, INPUT_SIZE), f32) * HT_WEIGHT_SCALE
    b1 = jnp.zeros((HT_SIZE,), f32)
    # residual projection Linear(256 -> 128)
    wrp = jax.random.normal(ks[1], (HT_SIZE, INPUT_SIZE), f32) / math.sqrt(INPUT_SIZE)
    brp = jnp.zeros((HT_SIZE,), f32)
    # FC blocks
    wf1 = jax.random.normal(ks[2], (FC_SIZES[0], HT_SIZE), f32) / math.sqrt(HT_SIZE)
    bf1 = jnp.zeros((FC_SIZES[0],), f32)
    wf2 = jax.random.normal(ks[3], (FC_SIZES[1], FC_SIZES[0]), f32) / math.sqrt(FC_SIZES[0])
    bf2 = jnp.zeros((FC_SIZES[1],), f32)
    # output layer
    wo = jax.random.normal(ks[4], (NUM_CLASSES, FC_SIZES[1]), f32) / math.sqrt(FC_SIZES[1])
    bo = jnp.zeros((NUM_CLASSES,), f32)
    return dict(w1=w1, b1=b1, wrp=wrp, brp=brp,
                wf1=wf1, bf1=bf1, wf2=wf2, bf2=bf2, wo=wo, bo=bo)


# ---------------- parameter prep: fold constants, fuse, pack, bf16 ------------
def prepare_params(raw):
    bf16, f32 = jnp.bfloat16, jnp.float32
    # Fused 256->256 weight: [hypertensor linear (BN_INV folded) | residual proj]
    w_ht = jnp.concatenate([raw["w1"].T * BN_INV, raw["wrp"].T], axis=1)       # (256, 256)
    # Output layer padded to 128 out columns (zero weights, -1e30 bias pads so
    # log_softmax over 128 columns == log_softmax over the real 10).
    wo_pad = jnp.zeros((FC_SIZES[1], OUT_PAD), f32).at[:, :NUM_CLASSES].set(raw["wo"].T)
    bo_pad = jnp.full((OUT_PAD,), -1e30, f32).at[:NUM_CLASSES].set(raw["bo"])
    # One (128, 384) bf16 slab: [wf1 | wf2 | wo_pad], BN_INV folded into FC weights.
    w_fc = jnp.concatenate([raw["wf1"].T * BN_INV, raw["wf2"].T * BN_INV, wo_pad], axis=1)
    # One (1, 640) f32 bias slab: [b_ht(256) | bf1(128) | bf2(128) | bo_pad(128)].
    b_all = jnp.concatenate([raw["b1"] * BN_INV, raw["brp"],
                             raw["bf1"] * BN_INV, raw["bf2"] * BN_INV, bo_pad])[None, :]
    return {"w_ht": w_ht.astype(bf16), "w_fc": w_fc.astype(bf16),
            "b_all": b_all.astype(f32)}


# ---------------- pure-JAX references ------------------------------------------
def _bdot(a, b):
    # Emulates the kernel's bf16 x bf16 MXU dot with f32 accumulation.
    return jnp.dot(a.astype(jnp.bfloat16).astype(jnp.float32),
                   b.astype(jnp.float32), precision=lax.Precision.HIGHEST)


def reference_prepared(x, p):
    """Same prepared (bf16-quantized, constant-folded, packed) params, same
    bf16-operand math. Validates the Pallas kernel implementation itself."""
    xf = x.reshape(x.shape[0], -1).astype(jnp.float32)
    b = p["b_all"]
    b_ht, bf1 = b[:, :_B_HT_END], b[:, _B_HT_END:_B_F1_END]
    bf2, bo = b[:, _B_F1_END:_B_F2_END], b[:, _B_F2_END:]
    wfc = p["w_fc"]
    y = _bdot(xf, p["w_ht"]) + b_ht
    z, res = y[:, :HT_SIZE], y[:, HT_SIZE:]
    t = jnp.tanh(z)
    z = _gelu_tanh(t * t * HT_POST_CONST + res)
    z = _gelu_tanh(_bdot(z, wfc[:, 0:FC_SIZES[0]]) + bf1)
    z = _gelu_tanh(_bdot(z, wfc[:, FC_SIZES[0]:FC_SIZES[0] + FC_SIZES[1]]) + bf2)
    logits = _bdot(z, wfc[:, FC_SIZES[0] + FC_SIZES[1]:]) + bo
    return jax.nn.log_softmax(logits, axis=1)[:, :NUM_CLASSES]


def reference_module(x, raw):
    """Unfolded eval-mode PyTorch forward semantics, raw f32 params, erf GELU
    in the FC blocks. Validates that folding/fusion + bf16 storage + tanh-GELU
    approximation preserve the module's forward (loose tolerance)."""
    hp = functools.partial(jnp.dot, precision=lax.Precision.HIGHEST)
    xf = x.reshape(x.shape[0], -1).astype(jnp.float32)
    z = hp(xf, raw["w1"].T) + raw["b1"]
    z = z * BN_INV                              # input_bn (eval, init stats)
    z = jnp.tanh(z) * HT_SCALE_PARAM            # tanh(z) * scale
    z = (z * HYPER_PRESCALE) ** 2               # order-2 hyperoperation
    z = z * BN_INV                              # output_bn
    z = z + hp(xf, raw["wrp"].T) + raw["brp"]   # residual projection
    z = _gelu_tanh(z)                           # HT activation (module uses tanh-GELU)
    z = _gelu_exact((hp(z, raw["wf1"].T) + raw["bf1"]) * BN_INV)
    z = _gelu_exact((hp(z, raw["wf2"].T) + raw["bf2"]) * BN_INV)
    logits = hp(z, raw["wo"].T) + raw["bo"]
    return jax.nn.log_softmax(logits, axis=1)


# ---------------- main ---------------------------------------------------------
if __name__ == "__main__":
    key = jax.random.PRNGKey(0)
    kx, kp = jax.random.split(key)
    x = jax.random.normal(kx, (BATCH,) + INPUT_SHAPE, dtype=jnp.float32)
    raw = init_raw_params(kp)
    params = prepare_params(raw)

    out = hypertensor_forward(x, params)
    out = jax.block_until_ready(out)

    assert out.shape == (BATCH, NUM_CLASSES), out.shape
    assert bool(jnp.all(jnp.isfinite(out))), "non-finite output"

    # 1) Kernel vs pure-JAX on identical prepared params / identical bf16
    #    operand quantization (divergence: MXU accumulation order + EUP
    #    transcendental approximations).
    ref = reference_prepared(x, params)
    assert bool(jnp.allclose(out, ref, rtol=1e-2, atol=1e-2)), (
        "kernel mismatch vs prepared reference: max abs err = "
        f"{float(jnp.max(jnp.abs(out - ref)))}"
    )

    # 2) Prepared/folded/bf16 params vs raw f32 module semantics (loose
    #    tolerance: measures bf16 quantization + tanh-GELU approximation,
    #    not kernel bugs).
    ref_mod = reference_module(x, raw)
    assert bool(jnp.allclose(ref, ref_mod, rtol=0.0, atol=1e-1)), (
        "folded/bf16 params diverge from module semantics: max abs err = "
        f"{float(jnp.max(jnp.abs(ref - ref_mod)))}"
    )

    print("KERNEL_OK")
</pallas_src>

<mosaic_0001>
module attributes {stable_mosaic.version = 11 : i64} {
  func.func @_network_kernel(%arg0: memref<2x256xf32, #tpu.memory_space<vmem>>, %arg1: memref<256x256xbf16, #tpu.memory_space<vmem>>, %arg2: memref<128x384xbf16, #tpu.memory_space<vmem>>, %arg3: memref<1x640xf32, #tpu.memory_space<vmem>>, %arg4: memref<2x128xf32, #tpu.memory_space<vmem>>) attributes {dimension_semantics = [], scalar_prefetch = 0 : i64, scratch_operands = 0 : i64, tpu.core_type = #tpu.core_type<tc>} {
    %c0 = arith.constant 0 : index
    %c0_0 = arith.constant 0 : index
    %0 = vector.load %arg0[%c0, %c0_0] : memref<2x256xf32, #tpu.memory_space<vmem>>, vector<2x256xf32>
    %1 = arith.truncf %0 : vector<2x256xf32> to vector<2x256xbf16>
    %c0_1 = arith.constant 0 : index
    %c0_2 = arith.constant 0 : index
    %2 = vector.load %arg3[%c0_1, %c0_2] : memref<1x640xf32, #tpu.memory_space<vmem>>, vector<1x256xf32>
    %c0_3 = arith.constant 0 : index
    %c256 = arith.constant 256 : index
    %3 = vector.load %arg3[%c0_3, %c256] : memref<1x640xf32, #tpu.memory_space<vmem>>, vector<1x128xf32>
    %c0_4 = arith.constant 0 : index
    %c384 = arith.constant 384 : index
    %4 = vector.load %arg3[%c0_4, %c384] : memref<1x640xf32, #tpu.memory_space<vmem>>, vector<1x128xf32>
    %c0_5 = arith.constant 0 : index
    %c512 = arith.constant 512 : index
    %5 = vector.load %arg3[%c0_5, %c512] : memref<1x640xf32, #tpu.memory_space<vmem>>, vector<1x128xf32>
    %c0_6 = arith.constant 0 : index
    %c0_7 = arith.constant 0 : index
    %6 = vector.load %arg1[%c0_6, %c0_7] : memref<256x256xbf16, #tpu.memory_space<vmem>>, vector<256x256xbf16>
    %cst = arith.constant dense<0.000000e+00> : vector<2x256xf32>
    %7 = tpu.matmul %1, %6, %cst {dimension_numbers = #tpu.dot_dimension_numbers<[1], [0], [0], [1], [0, 0, 1, 1], [], []>} : vector<2x256xbf16>, vector<256x256xbf16>, vector<2x256xf32> -> vector<2x256xf32>
    %8 = vector.broadcast %2 : vector<1x256xf32> to vector<2x256xf32>
    %9 = arith.addf %7, %8 : vector<2x256xf32>
    %10 = vector.extract_strided_slice %9 {offsets = [0, 0], sizes = [2, 128], strides = [1, 1]} : vector<2x256xf32> to vector<2x128xf32>
    %11 = vector.extract_strided_slice %9 {offsets = [0, 128], sizes = [2, 128], strides = [1, 1]} : vector<2x256xf32> to vector<2x128xf32>
    %12 = math.tanh %10 : vector<2x128xf32>
    %13 = arith.mulf %12, %12 : vector<2x128xf32>
    %cst_8 = arith.constant 6.24996892E-6 : f32
    %14 = vector.broadcast %cst_8 : f32 to vector<2x128xf32>
    %15 = arith.mulf %13, %14 : vector<2x128xf32>
    %16 = arith.addf %15, %11 : vector<2x128xf32>
    %cst_9 = arith.constant 5.000000e-01 : f32
    %17 = vector.broadcast %cst_9 : f32 to vector<2x128xf32>
    %18 = arith.mulf %17, %16 : vector<2x128xf32>
    %cst_10 = arith.constant 4.471500e-02 : f32
    %19 = vector.broadcast %cst_10 : f32 to vector<2x128xf32>
    %20 = arith.mulf %19, %16 : vector<2x128xf32>
    %21 = arith.mulf %20, %16 : vector<2x128xf32>
    %22 = arith.mulf %21, %16 : vector<2x128xf32>
    %23 = arith.addf %16, %22 : vector<2x128xf32>
    %cst_11 = arith.constant 0.797884583 : f32
    %24 = vector.broadcast %cst_11 : f32 to vector<2x128xf32>
    %25 = arith.mulf %24, %23 : vector<2x128xf32>
    %26 = math.tanh %25 : vector<2x128xf32>
    %cst_12 = arith.constant 1.000000e+00 : f32
    %27 = vector.broadcast %cst_12 : f32 to vector<2x128xf32>
    %28 = arith.addf %27, %26 : vector<2x128xf32>
    %29 = arith.mulf %18, %28 : vector<2x128xf32>
    %30 = arith.truncf %29 : vector<2x128xf32> to vector<2x128xbf16>
    %c0_13 = arith.constant 0 : index
    %c0_14 = arith.constant 0 : index
    %31 = vector.load %arg2[%c0_13, %c0_14] : memref<128x384xbf16, #tpu.memory_space<vmem>>, vector<128x128xbf16>
    %cst_15 = arith.constant dense<0.000000e+00> : vector<2x128xf32>
    %32 = tpu.matmul %30, %31, %cst_15 {dimension_numbers = #tpu.dot_dimension_numbers<[1], [0], [0], [1], [0, 0, 1, 1], [], []>} : vector<2x128xbf16>, vector<128x128xbf16>, vector<2x128xf32> -> vector<2x128xf32>
    %33 = vector.broadcast %3 : vector<1x128xf32> to vector<2x128xf32>
    %34 = arith.addf %32, %33 : vector<2x128xf32>
    %cst_16 = arith.constant 5.000000e-01 : f32
    %35 = vector.broadcast %cst_16 : f32 to vector<2x128xf32>
    %36 = arith.mulf %35, %34 : vector<2x128xf32>
    %cst_17 = arith.constant 4.471500e-02 : f32
    %37 = vector.broadcast %cst_17 : f32 to vector<2x128xf32>
    %38 = arith.mulf %37, %34 : vector<2x128xf32>
    %39 = arith.mulf %38, %34 : vector<2x128xf32>
    %40 = arith.mulf %39, %34 : vector<2x128xf32>
    %41 = arith.addf %34, %40 : vector<2x128xf32>
    %cst_18 = arith.constant 0.797884583 : f32
    %42 = vector.broadcast %cst_18 : f32 to vector<2x128xf32>
    %43 = arith.mulf %42, %41 : vector<2x128xf32>
    %44 = math.tanh %43 : vector<2x128xf32>
    %cst_19 = arith.constant 1.000000e+00 : f32
    %45 = vector.broadcast %cst_19 : f32 to vector<2x128xf32>
    %46 = arith.addf %45, %44 : vector<2x128xf32>
    %47 = arith.mulf %36, %46 : vector<2x128xf32>
    %48 = arith.truncf %47 : vector<2x128xf32> to vector<2x128xbf16>
    %c0_20 = arith.constant 0 : index
    %c128 = arith.constant 128 : index
    %49 = vector.load %arg2[%c0_20, %c128] : memref<128x384xbf16, #tpu.memory_space<vmem>>, vector<128x128xbf16>
    %cst_21 = arith.constant dense<0.000000e+00> : vector<2x128xf32>
    %50 = tpu.matmul %48, %49, %cst_21 {dimension_numbers = #tpu.dot_dimension_numbers<[1], [0], [0], [1], [0, 0, 1, 1], [], []>} : vector<2x128xbf16>, vector<128x128xbf16>, vector<2x128xf32> -> vector<2x128xf32>
    %51 = vector.broadcast %4 : vector<1x128xf32> to vector<2x128xf32>
    %52 = arith.addf %50, %51 : vector<2x128xf32>
    %cst_22 = arith.constant 5.000000e-01 : f32
    %53 = vector.broadcast %cst_22 : f32 to vector<2x128xf32>
    %54 = arith.mulf %53, %52 : vector<2x128xf32>
    %cst_23 = arith.constant 4.471500e-02 : f32
    %55 = vector.broadcast %cst_23 : f32 to vector<2x128xf32>
    %56 = arith.mulf %55, %52 : vector<2x128xf32>
    %57 = arith.mulf %56, %52 : vector<2x128xf32>
    %58 = arith.mulf %57, %52 : vector<2x128xf32>
    %59 = arith.addf %52, %58 : vector<2x128xf32>
    %cst_24 = arith.constant 0.797884583 : f32
    %60 = vector.broadcast %cst_24 : f32 to vector<2x128xf32>
    %61 = arith.mulf %60, %59 : vector<2x128xf32>
    %62 = math.tanh %61 : vector<2x128xf32>
    %cst_25 = arith.constant 1.000000e+00 : f32
    %63 = vector.broadcast %cst_25 : f32 to vector<2x128xf32>
    %64 = arith.addf %63, %62 : vector<2x128xf32>
    %65 = arith.mulf %54, %64 : vector<2x128xf32>
    %66 = arith.truncf %65 : vector<2x128xf32> to vector<2x128xbf16>
    %c0_26 = arith.constant 0 : index
    %c256_27 = arith.constant 256 : index
    %67 = vector.load %arg2[%c0_26, %c256_27] : memref<128x384xbf16, #tpu.memory_space<vmem>>, vector<128x128xbf16>
    %cst_28 = arith.constant dense<0.000000e+00> : vector<2x128xf32>
    %68 = tpu.matmul %66, %67, %cst_28 {dimension_numbers = #tpu.dot_dimension_numbers<[1], [0], [0], [1], [0, 0, 1, 1], [], []>} : vector<2x128xbf16>, vector<128x128xbf16>, vector<2x128xf32> -> vector<2x128xf32>
    %69 = vector.broadcast %5 : vector<1x128xf32> to vector<2x128xf32>
    %70 = arith.addf %68, %69 : vector<2x128xf32>
    %cst_29 = arith.constant dense<0xFF800000> : vector<2xf32>
    %71 = vector.multi_reduction <maximumf>, %70, %cst_29 [1] : vector<2x128xf32> to vector<2xf32>
    %72 = vector.shape_cast %71 : vector<2xf32> to vector<2x1xf32>
    %73 = vector.broadcast %72 : vector<2x1xf32> to vector<2x128xf32>
    %74 = arith.subf %70, %73 : vector<2x128xf32>
    %75 = math.exp %74 : vector<2x128xf32>
    %cst_30 = arith.constant dense<0.000000e+00> : vector<2xf32>
    %76 = vector.multi_reduction <add>, %75, %cst_30 [1] : vector<2x128xf32> to vector<2xf32>
    %77 = vector.shape_cast %76 : vector<2xf32> to vector<2x1xf32>
    %78 = math.log %77 : vector<2x1xf32>
    %79 = arith.addf %72, %78 : vector<2x1xf32>
    %80 = vector.broadcast %79 : vector<2x1xf32> to vector<2x128xf32>
    %81 = arith.subf %70, %80 : vector<2x128xf32>
    %c0_31 = arith.constant 0 : index
    %c0_32 = arith.constant 0 : index
    %82 = vector.load %arg4[%c0_31, %c0_32] : memref<2x128xf32, #tpu.memory_space<vmem>>, vector<2x128xf32>
    tpu.vector_store %arg4[%c0_31, %c0_32], %81 {strides = array<i32>} : memref<2x128xf32, #tpu.memory_space<vmem>>, vector<2x128xf32>,
    return
  }
}

</mosaic_0001>

<llo_original>
// kernel: hypertensor_forward.1
$region0: #{hypertensor_forward.1}
  #allocation0 [shape = 'u32[]', space=smem, size = 0x4, offset = 0x4, fixed_abs, tag = 'smem constant byte address 0x4 - core index']
  #allocation1 [shape = 'u32[144,128]{1,0:T(1,128)}', space=vmem, size = 0x12000, scoped, tag = 'internal scratch']
  %s0 = inlined_call_operand.vmem [shape: f32[2,256], index: 0, kind: input, shape index: {}]
  %s1 = inlined_call_operand.hbm [shape: bf16[256,256], index: 1, kind: input, shape index: {}]
  %s2 = inlined_call_operand.hbm [shape: bf16[128,384], index: 2, kind: input, shape index: {}]
  %s3 = inlined_call_operand.vmem [shape: f32[1,640], index: 3, kind: input, shape index: {}]
  %s4 = inlined_call_operand.hbm [shape: f32[2,128], index: 4, kind: output, shape index: {}]
  %s5 = sld [smem:[#allocation0]]
  $region34: #{hypertensor_forward.1} parent=0
    _
  %s7 = ssub.s32 1, %s5
  %s8 = scalar_select 0, %s7, %s5
  $region1: #{hypertensor_forward.1} parent=0
    #allocation2 [shape = 'u8[131072]{0}', space=vmem, size = 0x20000, scoped, tag = 'input window, operand 1, single buffered']
    #allocation3 [shape = 's32[1]{0}', space=sflag, size = 0x4, scoped, tag = 'scoped memory for hypertensor_forward.1']
    #allocation4 [shape = 's32[1]{0}', space=sflag, size = 0x4, scoped, tag = 'scoped memory for hypertensor_forward.1']
    #allocation5 [shape = 'u8[98304]{0}', space=vmem, size = 0x18000, scoped, tag = 'input window, operand 2, single buffered']
    #allocation6 [shape = 's32[1]{0}', space=sflag, size = 0x4, scoped, tag = 'scoped memory for hypertensor_forward.1']
    #allocation7 [shape = 'u8[1024]{0}', space=vmem, size = 0x400, scoped, tag = 'output window, operand 0, single buffered']
    %9 = vsyncpa [#allocation3], 0
    %10 = vsyncpa [#allocation6], 0
    %11 = vsyncpa [#allocation4], 0
    // Predicated region
    $region2: #{hypertensor_forward.1} parent=1 // pred_check
      _
    $region3: #{hypertensor_forward.1} parent=1 // pred_check_branch
      %13 = sbr.rel (0) target = $region5
    $region4: #{hypertensor_forward.1} parent=1 // pred_region
      _
    $region5: #{hypertensor_forward.1} parent=1 // pred_fallthru
      _
    // Predicated region
    $region6: #{hypertensor_forward.1} parent=1 // pred_check
      _
    $region7: #{hypertensor_forward.1} parent=1 // pred_check_branch
      %15 = sbr.rel (0) target = $region9
    $region8: #{hypertensor_forward.1} parent=1 // pred_region
      %s17 = ssub.s32 4096, 4096
      %18 = vsyncadd [#allocation3], %s17
      %s19 = sshll.u32 [#allocation2], 4
      %s20 = int_to_ptr.vmem [resolvable:$true] %s19
      %25 = dma.hbm_to_vmem [thread:$0]  %s1, 4096, %s20, [#allocation3], 128, 128, 8
    $region9: #{hypertensor_forward.1} parent=1 // pred_fallthru
      _
    // Predicated region
    $region10: #{hypertensor_forward.1} parent=1 // pred_check
      _
    $region11: #{hypertensor_forward.1} parent=1 // pred_check_branch
      %27 = sbr.rel (0) target = $region13
    $region12: #{hypertensor_forward.1} parent=1 // pred_region
      %s29 = ssub.s32 3072, 3072
      %30 = vsyncadd [#allocation6], %s29
      %s31 = sshll.u32 [#allocation5], 4
      %s32 = int_to_ptr.vmem [resolvable:$true] %s31
      %37 = dma.hbm_to_vmem [thread:$0]  %s2, 3072, %s32, [#allocation6], 192, 192, 12
    $region13: #{hypertensor_forward.1} parent=1 // pred_fallthru
      _
    // Predicated region
    $region14: #{hypertensor_forward.1} parent=1 // pred_check
      _
    $region15: #{hypertensor_forward.1} parent=1 // pred_check_branch
      %39 = sbr.rel (0) target = $region17
    $region16: #{hypertensor_forward.1} parent=1 // pred_region
      _
    $region17: #{hypertensor_forward.1} parent=1 // pred_fallthru
      _
    // Predicated region
    $region18: #{hypertensor_forward.1} parent=1 // pred_check
      _
    $region19: #{hypertensor_forward.1} parent=1 // pred_check_branch
      %41 = sbr.rel (0) target = $region21
    $region20: #{hypertensor_forward.1} parent=1 // pred_region
      %42 = dma.done [#allocation3], 4096
    $region21: #{hypertensor_forward.1} parent=1 // pred_fallthru
      _
    // Predicated region
    $region22: #{hypertensor_forward.1} parent=1 // pred_check
      _
    $region23: #{hypertensor_forward.1} parent=1 // pred_check_branch
      %44 = sbr.rel (0) target = $region25
    $region24: #{hypertensor_forward.1} parent=1 // pred_region
      %45 = dma.done [#allocation6], 3072
    $region25: #{hypertensor_forward.1} parent=1 // pred_fallthru
      _
    %v47 = vld [vmem:[%s0] sm:$0xf]
    %v50 = vunpack.c.l.s4 1983009808
    %v51 = vunpack.c.0.s8 %v50
    %v52 = vlaneseq
    %v53 = vshrl.u32 %v52, 7
    %v54 = vsub.s32 %v51, %v53
    %v55 = vrot.slane %v47, %v54
    %v56 = vcombine.high %v55, %v55
    %v59 = vpack.c.bf16 %v55, %v55
    %v60 = vpack.c.bf16 %v56, %v56
    %v61 = vld [vmem:[%s3] sm:$0x3]
    %v62 = vld [vmem:[%s3 + $0x2] sm:$0x1]
    %v63 = vld [vmem:[%s3 + $0x3] sm:$0x1]
    %v64 = vld [vmem:[%s3 + $0x4] sm:$0x1]
    %v65 = vld [vmem:[#allocation2] sm:$0xff]
    %v66 = vld [vmem:[#allocation2 + $0x8] sm:$0xff]
    %v67 = vld [vmem:[#allocation2 + $0x10] sm:$0xff]
    %v68 = vld [vmem:[#allocation2 + $0x18] sm:$0xff]
    %v69 = vld [vmem:[#allocation2 + $0x20] sm:$0xff]
    %v70 = vld [vmem:[#allocation2 + $0x28] sm:$0xff]
    %v71 = vld [vmem:[#allocation2 + $0x30] sm:$0xff]
    %v72 = vld [vmem:[#allocation2 + $0x38] sm:$0xff]
    %v73 = vld [vmem:[#allocation2 + $0x40] sm:$0xff]
    %v74 = vld [vmem:[#allocation2 + $0x48] sm:$0xff]
    %v75 = vld [vmem:[#allocation2 + $0x50] sm:$0xff]
    %v76 = vld [vmem:[#allocation2 + $0x58] sm:$0xff]
    %v77 = vld [vmem:[#allocation2 + $0x60] sm:$0xff]
    %v78 = vld [vmem:[#allocation2 + $0x68] sm:$0xff]
    %v79 = vld [vmem:[#allocation2 + $0x70] sm:$0xff]
    %v80 = vld [vmem:[#allocation2 + $0x78] sm:$0xff]
    %v81 = vld [vmem:[#allocation2 + $0x80] sm:$0xff]
    %v82 = vld [vmem:[#allocation2 + $0x88] sm:$0xff]
    %v83 = vld [vmem:[#allocation2 + $0x90] sm:$0xff]
    %v84 = vld [vmem:[#allocation2 + $0x98] sm:$0xff]
    %v85 = vld [vmem:[#allocation2 + $0xa0] sm:$0xff]
    %v86 = vld [vmem:[#allocation2 + $0xa8] sm:$0xff]
    %v87 = vld [vmem:[#allocation2 + $0xb0] sm:$0xff]
    %v88 = vld [vmem:[#allocation2 + $0xb8] sm:$0xff]
    %v89 = vld [vmem:[#allocation2 + $0xc0] sm:$0xff]
    %v90 = vld [vmem:[#allocation2 + $0xc8] sm:$0xff]
    %v91 = vld [vmem:[#allocation2 + $0xd0] sm:$0xff]
    %v92 = vld [vmem:[#allocation2 + $0xd8] sm:$0xff]
    %v93 = vld [vmem:[#allocation2 + $0xe0] sm:$0xff]
    %v94 = vld [vmem:[#allocation2 + $0xe8] sm:$0xff]
    %v95 = vld [vmem:[#allocation2 + $0xf0] sm:$0xff]
    %v96 = vld [vmem:[#allocation2 + $0xf8] sm:$0xff]
    %v98 = vlaneseq
    %v99 = vshrl.u32 %v98, 7
    %v100 = vsub.s32 0, %v99
    %v101 = vrot.slane %v61, %v100
    %v102 = vlaneseq
    %v103 = vshrl.u32 %v102, 7
    %v104 = vsub.s32 1, %v103
    %v105 = vrot.slane %v61, %v104
    %v140 = vunpack.c.l.b16 %v65
    %v141 = vunpack.c.h.b16 %v65
    %v142 = vunpack.c.l.b16 %v66
    %v143 = vunpack.c.h.b16 %v66
    %v144 = vunpack.c.l.b16 %v67
    %v145 = vunpack.c.h.b16 %v67
    %v146 = vunpack.c.l.b16 %v68
    %v147 = vunpack.c.h.b16 %v68
    %v148 = vunpack.c.l.b16 %v69
    %v149 = vunpack.c.h.b16 %v69
    %v150 = vunpack.c.l.b16 %v70
    %v151 = vunpack.c.h.b16 %v70
    %v152 = vunpack.c.l.b16 %v71
    %v153 = vunpack.c.h.b16 %v71
    %v154 = vunpack.c.l.b16 %v72
    %v155 = vunpack.c.h.b16 %v72
    %v156 = vunpack.c.l.b16 %v73
    %v157 = vunpack.c.h.b16 %v73
    %v158 = vunpack.c.l.b16 %v74
    %v159 = vunpack.c.h.b16 %v74
    %v160 = vunpack.c.l.b16 %v75
    %v161 = vunpack.c.h.b16 %v75
    %v162 = vunpack.c.l.b16 %v76
    %v163 = vunpack.c.h.b16 %v76
    %v164 = vunpack.c.l.b16 %v77
    %v165 = vunpack.c.h.b16 %v77
    %v166 = vunpack.c.l.b16 %v78
    %v167 = vunpack.c.h.b16 %v78
    %v168 = vunpack.c.l.b16 %v79
    %v169 = vunpack.c.h.b16 %v79
    %v170 = vunpack.c.l.b16 %v80
    %v171 = vunpack.c.h.b16 %v80
    %v172 = vunpack.c.l.b16 %v81
    %v173 = vunpack.c.h.b16 %v81
    %v174 = vunpack.c.l.b16 %v82
    %v175 = vunpack.c.h.b16 %v82
    %v176 = vunpack.c.l.b16 %v83
    %v177 = vunpack.c.h.b16 %v83
    %v178 = vunpack.c.l.b16 %v84
    %v179 = vunpack.c.h.b16 %v84
    %v180 = vunpack.c.l.b16 %v85
    %v181 = vunpack.c.h.b16 %v85
    %v182 = vunpack.c.l.b16 %v86
    %v183 = vunpack.c.h.b16 %v86
    %v184 = vunpack.c.l.b16 %v87
    %v185 = vunpack.c.h.b16 %v87
    %v186 = vunpack.c.l.b16 %v88
    %v187 = vunpack.c.h.b16 %v88
    %v188 = vunpack.c.l.b16 %v89
    %v189 = vunpack.c.h.b16 %v89
    %v190 = vunpack.c.l.b16 %v90
    %v191 = vunpack.c.h.b16 %v90
    %v192 = vunpack.c.l.b16 %v91
    %v193 = vunpack.c.h.b16 %v91
    %v194 = vunpack.c.l.b16 %v92
    %v195 = vunpack.c.h.b16 %v92
    %v196 = vunpack.c.l.b16 %v93
    %v197 = vunpack.c.h.b16 %v93
    %v198 = vunpack.c.l.b16 %v94
    %v199 = vunpack.c.h.b16 %v94
    %v200 = vunpack.c.l.b16 %v95
    %v201 = vunpack.c.h.b16 %v95
    %v202 = vunpack.c.l.b16 %v96
    %v203 = vunpack.c.h.b16 %v96
    %v204 = vpack.c.b16 %v142, %v140
    %v205 = vpack.c.b16 %v143, %v141
    %v206 = vpack.c.b16 %v146, %v144
    %v207 = vpack.c.b16 %v147, %v145
    %v208 = vpack.c.b16 %v150, %v148
    %v209 = vpack.c.b16 %v151, %v149
    %v210 = vpack.c.b16 %v154, %v152
    %v211 = vpack.c.b16 %v155, %v153
    %v212 = vpack.c.b16 %v158, %v156
    %v213 = vpack.c.b16 %v159, %v157
    %v214 = vpack.c.b16 %v162, %v160
    %v215 = vpack.c.b16 %v163, %v161
    %v216 = vpack.c.b16 %v166, %v164
    %v217 = vpack.c.b16 %v167, %v165
    %v218 = vpack.c.b16 %v170, %v168
    %v219 = vpack.c.b16 %v171, %v169
    %v220 = vpack.c.b16 %v174, %v172
    %v221 = vpack.c.b16 %v175, %v173
    %v222 = vpack.c.b16 %v178, %v176
    %v223 = vpack.c.b16 %v179, %v177
    %v224 = vpack.c.b16 %v182, %v180
    %v225 = vpack.c.b16 %v183, %v181
    %v226 = vpack.c.b16 %v186, %v184
    %v227 = vpack.c.b16 %v187, %v185
    %v228 = vpack.c.b16 %v190, %v188
    %v229 = vpack.c.b16 %v191, %v189
    %v230 = vpack.c.b16 %v194, %v192
    %v231 = vpack.c.b16 %v195, %v193
    %v232 = vpack.c.b16 %v198, %v196
    %v233 = vpack.c.b16 %v199, %v197
    %v234 = vpack.c.b16 %v202, %v200
    %v235 = vpack.c.b16 %v203, %v201
    %268 = vmatprep.subr.bf16.mxu0 %v205
    %269 = vmatpush1.bf16.msra.mxu0 %v204
    %270 = vmatprep.subr.bf16.mxu0 %v207
    %271 = vmatpush1.bf16.msra.mxu0 %v206
    %272 = vmatprep.subr.bf16.mxu0 %v209
    %273 = vmatpush1.bf16.msra.mxu0 %v208
    %274 = vmatprep.subr.bf16.mxu0 %v211
    %275 = vmatpush1.bf16.msra.mxu0 %v210
    %276 = vmatprep.subr.bf16.mxu0 %v213
    %277 = vmatpush1.bf16.msra.mxu0 %v212
    %278 = vmatprep.subr.bf16.mxu0 %v215
    %279 = vmatpush1.bf16.msra.mxu0 %v214
    %280 = vmatprep.subr.bf16.mxu0 %v217
    %281 = vmatpush1.bf16.msra.mxu0 %v216
    %282 = vmatprep.subr.bf16.mxu0 %v219
    %283 = vmatpush1.bf16.msra.mxu0 %v218
    %284 = vmatprep.subr.bf16.mxu0 %v221
    %285 = vmatpush1.bf16.msra.mxu0 %v220
    %286 = vmatprep.subr.bf16.mxu0 %v223
    %287 = vmatpush1.bf16.msra.mxu0 %v222
    %288 = vmatprep.subr.bf16.mxu0 %v225
    %289 = vmatpush1.bf16.msra.mxu0 %v224
    %290 = vmatprep.subr.bf16.mxu0 %v227
    %291 = vmatpush1.bf16.msra.mxu0 %v226
    %292 = vmatprep.subr.bf16.mxu0 %v229
    %293 = vmatpush1.bf16.msra.mxu0 %v228
    %294 = vmatprep.subr.bf16.mxu0 %v231
    %295 = vmatpush1.bf16.msra.mxu0 %v230
    %296 = vmatprep.subr.bf16.mxu0 %v233
    %297 = vmatpush1.bf16.msra.mxu0 %v232
    %298 = vmatprep.subr.bf16.mxu0 %v235
    %299 = vmatpush1.bf16.msra.mxu0 %v234
    %300 = vmatprep.mubr.bf16.mxu0 %v60
    %301 = vmatmul.mubr.bf16.gmra.mrb[0].mxu0 %v59
    %v302 = vpop.f32.mrb[0].mxu0
    %v303 = vadd.f32 %v101, %v302
    %v304 = vpop.f32.mrb[0].mxu0
    %v305 = vadd.f32 %v105, %v304
    %v306 = vpop.f32.mrb[0].mxu0
    %v307 = vpop.f32.mrb[0].mxu0
    %308 = vdwg.mxu0
    %v309 = vtanh.pop %v303
    %v310 = vmul.f32 %v309, %v309
    %v311 = vmul.f32 %v310, 6.249969e-06
    %v312 = vadd.f32 %v311, %v305
    %v313 = vmul.f32 %v312, 0.5
    %v314 = vmul.f32 %v312, 0.044715
    %v315 = vmul.f32 %v314, %v312
    %v316 = vmul.f32 %v315, %v312
    %v317 = vadd.f32 %v312, %v316
    %v318 = vmul.f32 %v317, 0.7978846
    %v319 = vtanh.pop %v318
    %v320 = vadd.f32 %v319, 1.0
    %v321 = vmul.f32 %v313, %v320
    %v322 = vpack.c.bf16 %v321, %v321
    %v323 = vld [vmem:[#allocation5] sm:$0xf]
    %v324 = vld [vmem:[#allocation5 + $0xc] sm:$0xf]
    %v325 = vld [vmem:[#allocation5 + $0x18] sm:$0xf]
    %v326 = vld [vmem:[#allocation5 + $0x24] sm:$0xf]
    %v327 = vld [vmem:[#allocation5 + $0x30] sm:$0xf]
    %v328 = vld [vmem:[#allocation5 + $0x3c] sm:$0xf]
    %v329 = vld [vmem:[#allocation5 + $0x48] sm:$0xf]
    %v330 = vld [vmem:[#allocation5 + $0x54] sm:$0xf]
    %v331 = vld [vmem:[#allocation5 + $0x60] sm:$0xf]
    %v332 = vld [vmem:[#allocation5 + $0x6c] sm:$0xf]
    %v333 = vld [vmem:[#allocation5 + $0x78] sm:$0xf]
    %v334 = vld [vmem:[#allocation5 + $0x84] sm:$0xf]
    %v335 = vld [vmem:[#allocation5 + $0x90] sm:$0xf]
    %v336 = vld [vmem:[#allocation5 + $0x9c] sm:$0xf]
    %v337 = vld [vmem:[#allocation5 + $0xa8] sm:$0xf]
    %v338 = vld [vmem:[#allocation5 + $0xb4] sm:$0xf]
    %v340 = vlaneseq
    %v341 = vshrl.u32 %v340, 7
    %v342 = vsub.s32 0, %v341
    %v343 = vrot.slane %v62, %v342
    %v361 = vunpack.c.l.b16 %v323
    %v362 = vunpack.c.l.b16 %v324
    %v363 = vunpack.c.l.b16 %v325
    %v364 = vunpack.c.l.b16 %v326
    %v365 = vunpack.c.l.b16 %v327
    %v366 = vunpack.c.l.b16 %v328
    %v367 = vunpack.c.l.b16 %v329
    %v368 = vunpack.c.l.b16 %v330
    %v369 = vunpack.c.l.b16 %v331
    %v370 = vunpack.c.l.b16 %v332
    %v371 = vunpack.c.l.b16 %v333
    %v372 = vunpack.c.l.b16 %v334
    %v373 = vunpack.c.l.b16 %v335
    %v374 = vunpack.c.l.b16 %v336
    %v375 = vunpack.c.l.b16 %v337
    %v376 = vunpack.c.l.b16 %v338
    %v377 = vpack.c.b16 %v362, %v361
    %v378 = vpack.c.b16 %v364, %v363
    %v379 = vpack.c.b16 %v366, %v365
    %v380 = vpack.c.b16 %v368, %v367
    %v381 = vpack.c.b16 %v370, %v369
    %v382 = vpack.c.b16 %v372, %v371
    %v383 = vpack.c.b16 %v374, %v373
    %v384 = vpack.c.b16 %v376, %v375
    %393 = vmatprep.subr.bf16.mxu0 0
    %394 = vmatpush1.bf16.msra.mxu0 %v377
    %395 = vmatprep.subr.bf16.mxu0 0
    %396 = vmatpush1.bf16.msra.mxu0 %v378
    %397 = vmatprep.subr.bf16.mxu0 0
    %398 = vmatpush1.bf16.msra.mxu0 %v379
    %399 = vmatprep.subr.bf16.mxu0 0
    %400 = vmatpush1.bf16.msra.mxu0 %v380
    %401 = vmatprep.subr.bf16.mxu0 0
    %402 = vmatpush1.bf16.msra.mxu0 %v381
    %403 = vmatprep.subr.bf16.mxu0 0
    %404 = vmatpush1.bf16.msra.mxu0 %v382
    %405 = vmatprep.subr.bf16.mxu0 0
    %406 = vmatpush1.bf16.msra.mxu0 %v383
    %407 = vmatprep.subr.bf16.mxu0 0
    %408 = vmatpush1.bf16.msra.mxu0 %v384
    %409 = vmatprep.subr.bf16.mxu0 0
    %410 = vmatpush1.bf16.msra.mxu0 0
    %411 = vmatprep.subr.bf16.mxu0 0
    %412 = vmatpush1.bf16.msra.mxu0 0
    %413 = vmatprep.subr.bf16.mxu0 0
    %414 = vmatpush1.bf16.msra.mxu0 0
    %415 = vmatprep.subr.bf16.mxu0 0
    %416 = vmatpush1.bf16.msra.mxu0 0
    %417 = vmatprep.subr.bf16.mxu0 0
    %418 = vmatpush1.bf16.msra.mxu0 0
    %419 = vmatprep.subr.bf16.mxu0 0
    %420 = vmatpush1.bf16.msra.mxu0 0
    %421 = vmatprep.subr.bf16.mxu0 0
    %422 = vmatpush1.bf16.msra.mxu0 0
    %423 = vmatprep.subr.bf16.mxu0 0
    %424 = vmatpush1.bf16.msra.mxu0 0
    %425 = vmatprep.mubr.bf16.mxu0 0
    %426 = vmatmul.mubr.bf16.gmra.mrb[0].mxu0 %v322
    %v427 = vpop.f32.mrb[0].mxu0
    %v428 = vadd.f32 %v343, %v427
    %v429 = vpop.f32.mrb[0].mxu0
    %v430 = vpop.f32.mrb[0].mxu0
    %v431 = vpop.f32.mrb[0].mxu0
    %432 = vdwg.mxu0
    %v433 = vmul.f32 %v428, 0.5
    %v434 = vmul.f32 %v428, 0.044715
    %v435 = vmul.f32 %v434, %v428
    %v436 = vmul.f32 %v435, %v428
    %v437 = vadd.f32 %v428, %v436
    %v438 = vmul.f32 %v437, 0.7978846
    %v439 = vtanh.pop %v438
    %v440 = vadd.f32 %v439, 1.0
    %v441 = vmul.f32 %v433, %v440
    %v442 = vpack.c.bf16 %v441, %v441
    %v443 = vld [vmem:[#allocation5 + $0x4] sm:$0xf]
    %v444 = vld [vmem:[#allocation5 + $0x10] sm:$0xf]
    %v445 = vld [vmem:[#allocation5 + $0x1c] sm:$0xf]
    %v446 = vld [vmem:[#allocation5 + $0x28] sm:$0xf]
    %v447 = vld [vmem:[#allocation5 + $0x34] sm:$0xf]
    %v448 = vld [vmem:[#allocation5 + $0x40] sm:$0xf]
    %v449 = vld [vmem:[#allocation5 + $0x4c] sm:$0xf]
    %v450 = vld [vmem:[#allocation5 + $0x58] sm:$0xf]
    %v451 = vld [vmem:[#allocation5 + $0x64] sm:$0xf]
    %v452 = vld [vmem:[#allocation5 + $0x70] sm:$0xf]
    %v453 = vld [vmem:[#allocation5 + $0x7c] sm:$0xf]
    %v454 = vld [vmem:[#allocation5 + $0x88] sm:$0xf]
    %v455 = vld [vmem:[#allocation5 + $0x94] sm:$0xf]
    %v456 = vld [vmem:[#allocation5 + $0xa0] sm:$0xf]
    %v457 = vld [vmem:[#allocation5 + $0xac] sm:$0xf]
    %v458 = vld [vmem:[#allocation5 + $0xb8] sm:$0xf]
    %v460 = vlaneseq
    %v461 = vshrl.u32 %v460, 7
    %v462 = vsub.s32 0, %v461
    %v463 = vrot.slane %v63, %v462
    %v481 = vunpack.c.l.b16 %v443
    %v482 = vunpack.c.l.b16 %v444
    %v483 = vunpack.c.l.b16 %v445
    %v484 = vunpack.c.l.b16 %v446
    %v485 = vunpack.c.l.b16 %v447
    %v486 = vunpack.c.l.b16 %v448
    %v487 = vunpack.c.l.b16 %v449
    %v488 = vunpack.c.l.b16 %v450
    %v489 = vunpack.c.l.b16 %v451
    %v490 = vunpack.c.l.b16 %v452
    %v491 = vunpack.c.l.b16 %v453
    %v492 = vunpack.c.l.b16 %v454
    %v493 = vunpack.c.l.b16 %v455
    %v494 = vunpack.c.l.b16 %v456
    %v495 = vunpack.c.l.b16 %v457
    %v496 = vunpack.c.l.b16 %v458
    %v497 = vpack.c.b16 %v482, %v481
    %v498 = vpack.c.b16 %v484, %v483
    %v499 = vpack.c.b16 %v486, %v485
    %v500 = vpack.c.b16 %v488, %v487
    %v501 = vpack.c.b16 %v490, %v489
    %v502 = vpack.c.b16 %v492, %v491
    %v503 = vpack.c.b16 %v494, %v493
    %v504 = vpack.c.b16 %v496, %v495
    %513 = vmatprep.subr.bf16.mxu0 0
    %514 = vmatpush1.bf16.msra.mxu0 %v497
    %515 = vmatprep.subr.bf16.mxu0 0
    %516 = vmatpush1.bf16.msra.mxu0 %v498
    %517 = vmatprep.subr.bf16.mxu0 0
    %518 = vmatpush1.bf16.msra.mxu0 %v499
    %519 = vmatprep.subr.bf16.mxu0 0
    %520 = vmatpush1.bf16.msra.mxu0 %v500
    %521 = vmatprep.subr.bf16.mxu0 0
    %522 = vmatpush1.bf16.msra.mxu0 %v501
    %523 = vmatprep.subr.bf16.mxu0 0
    %524 = vmatpush1.bf16.msra.mxu0 %v502
    %525 = vmatprep.subr.bf16.mxu0 0
    %526 = vmatpush1.bf16.msra.mxu0 %v503
    %527 = vmatprep.subr.bf16.mxu0 0
    %528 = vmatpush1.bf16.msra.mxu0 %v504
    %529 = vmatprep.subr.bf16.mxu0 0
    %530 = vmatpush1.bf16.msra.mxu0 0
    %531 = vmatprep.subr.bf16.mxu0 0
    %532 = vmatpush1.bf16.msra.mxu0 0
    %533 = vmatprep.subr.bf16.mxu0 0
    %534 = vmatpush1.bf16.msra.mxu0 0
    %535 = vmatprep.subr.bf16.mxu0 0
    %536 = vmatpush1.bf16.msra.mxu0 0
    %537 = vmatprep.subr.bf16.mxu0 0
    %538 = vmatpush1.bf16.msra.mxu0 0
    %539 = vmatprep.subr.bf16.mxu0 0
    %540 = vmatpush1.bf16.msra.mxu0 0
    %541 = vmatprep.subr.bf16.mxu0 0
    %542 = vmatpush1.bf16.msra.mxu0 0
    %543 = vmatprep.subr.bf16.mxu0 0
    %544 = vmatpush1.bf16.msra.mxu0 0
    %545 = vmatprep.mubr.bf16.mxu0 0
    %546 = vmatmul.mubr.bf16.gmra.mrb[0].mxu0 %v442
    %v547 = vpop.f32.mrb[0].mxu0
    %v548 = vadd.f32 %v463, %v547
    %v549 = vpop.f32.mrb[0].mxu0
    %v550 = vpop.f32.mrb[0].mxu0
    %v551 = vpop.f32.mrb[0].mxu0
    %552 = vdwg.mxu0
    %v553 = vmul.f32 %v548, 0.5
    %v554 = vmul.f32 %v548, 0.044715
    %v555 = vmul.f32 %v554, %v548
    %v556 = vmul.f32 %v555, %v548
    %v557 = vadd.f32 %v548, %v556
    %v558 = vmul.f32 %v557, 0.7978846
    %v559 = vtanh.pop %v558
    %v560 = vadd.f32 %v559, 1.0
    %v561 = vmul.f32 %v553, %v560
    %v562 = vpack.c.bf16 %v561, %v561
    %v563 = vld [vmem:[#allocation5 + $0x8] sm:$0xf]
    %v564 = vld [vmem:[#allocation5 + $0x14] sm:$0xf]
    %v565 = vld [vmem:[#allocation5 + $0x20] sm:$0xf]
    %v566 = vld [vmem:[#allocation5 + $0x2c] sm:$0xf]
    %v567 = vld [vmem:[#allocation5 + $0x38] sm:$0xf]
    %v568 = vld [vmem:[#allocation5 + $0x44] sm:$0xf]
    %v569 = vld [vmem:[#allocation5 + $0x50] sm:$0xf]
    %v570 = vld [vmem:[#allocation5 + $0x5c] sm:$0xf]
    %v571 = vld [vmem:[#allocation5 + $0x68] sm:$0xf]
    %v572 = vld [vmem:[#allocation5 + $0x74] sm:$0xf]
    %v573 = vld [vmem:[#allocation5 + $0x80] sm:$0xf]
    %v574 = vld [vmem:[#allocation5 + $0x8c] sm:$0xf]
    %v575 = vld [vmem:[#allocation5 + $0x98] sm:$0xf]
    %v576 = vld [vmem:[#allocation5 + $0xa4] sm:$0xf]
    %v577 = vld [vmem:[#allocation5 + $0xb0] sm:$0xf]
    %v578 = vld [vmem:[#allocation5 + $0xbc] sm:$0xf]
    %v580 = vlaneseq
    %v581 = vshrl.u32 %v580, 7
    %v582 = vsub.s32 0, %v581
    %v583 = vrot.slane %v64, %v582
    %v601 = vunpack.c.l.b16 %v563
    %v602 = vunpack.c.l.b16 %v564
    %v603 = vunpack.c.l.b16 %v565
    %v604 = vunpack.c.l.b16 %v566
    %v605 = vunpack.c.l.b16 %v567
    %v606 = vunpack.c.l.b16 %v568
    %v607 = vunpack.c.l.b16 %v569
    %v608 = vunpack.c.l.b16 %v570
    %v609 = vunpack.c.l.b16 %v571
    %v610 = vunpack.c.l.b16 %v572
    %v611 = vunpack.c.l.b16 %v573
    %v612 = vunpack.c.l.b16 %v574
    %v613 = vunpack.c.l.b16 %v575
    %v614 = vunpack.c.l.b16 %v576
    %v615 = vunpack.c.l.b16 %v577
    %v616 = vunpack.c.l.b16 %v578
    %v617 = vpack.c.b16 %v602, %v601
    %v618 = vpack.c.b16 %v604, %v603
    %v619 = vpack.c.b16 %v606, %v605
    %v620 = vpack.c.b16 %v608, %v607
    %v621 = vpack.c.b16 %v610, %v609
    %v622 = vpack.c.b16 %v612, %v611
    %v623 = vpack.c.b16 %v614, %v613
    %v624 = vpack.c.b16 %v616, %v615
    %633 = vmatprep.subr.bf16.mxu0 0
    %634 = vmatpush1.bf16.msra.mxu0 %v617
    %635 = vmatprep.subr.bf16.mxu0 0
    %636 = vmatpush1.bf16.msra.mxu0 %v618
    %637 = vmatprep.subr.bf16.mxu0 0
    %638 = vmatpush1.bf16.msra.mxu0 %v619
    %639 = vmatprep.subr.bf16.mxu0 0
    %640 = vmatpush1.bf16.msra.mxu0 %v620
    %641 = vmatprep.subr.bf16.mxu0 0
    %642 = vmatpush1.bf16.msra.mxu0 %v621
    %643 = vmatprep.subr.bf16.mxu0 0
    %644 = vmatpush1.bf16.msra.mxu0 %v622
    %645 = vmatprep.subr.bf16.mxu0 0
    %646 = vmatpush1.bf16.msra.mxu0 %v623
    %647 = vmatprep.subr.bf16.mxu0 0
    %648 = vmatpush1.bf16.msra.mxu0 %v624
    %649 = vmatprep.subr.bf16.mxu0 0
    %650 = vmatpush1.bf16.msra.mxu0 0
    %651 = vmatprep.subr.bf16.mxu0 0
    %652 = vmatpush1.bf16.msra.mxu0 0
    %653 = vmatprep.subr.bf16.mxu0 0
    %654 = vmatpush1.bf16.msra.mxu0 0
    %655 = vmatprep.subr.bf16.mxu0 0
    %656 = vmatpush1.bf16.msra.mxu0 0
    %657 = vmatprep.subr.bf16.mxu0 0
    %658 = vmatpush1.bf16.msra.mxu0 0
    %659 = vmatprep.subr.bf16.mxu0 0
    %660 = vmatpush1.bf16.msra.mxu0 0
    %661 = vmatprep.subr.bf16.mxu0 0
    %662 = vmatpush1.bf16.msra.mxu0 0
    %663 = vmatprep.subr.bf16.mxu0 0
    %664 = vmatpush1.bf16.msra.mxu0 0
    %665 = vmatprep.mubr.bf16.mxu0 0
    %666 = vmatmul.mubr.bf16.gmra.mrb[0].mxu0 %v562
    %v667 = vpop.f32.mrb[0].mxu0
    %v668 = vadd.f32 %v583, %v667
    %v669 = vpop.f32.mrb[0].mxu0
    %v670 = vpop.f32.mrb[0].mxu0
    %v671 = vpop.f32.mrb[0].mxu0
    %672 = vdwg.mxu0
    %vm673 = vcmask 1041408
    %v674 = vsel %vm673, %v668, -inf
    %675 = vmax.xlane.f32.xlu0 %v674
    %v676 = vpop.xlane.xlu0 %675
    %v677 = vsub.f32 %v668, %v676
    %v678 = vmul.f32 %v677, 1.442695
    %v679 = vpow.pop %v678
    %v680 = vsel %vm673, %v679, 0.0
    %681 = vadd.xlane.f32.xlu0 %v680
    %v682 = vpop.xlane.xlu0 %681
    %v683 = vlog2.pop %v682
    %v684 = vmul.f32 %v683, 0.6931472
    %v685 = vadd.f32 %v676, %v684
    %v686 = vsub.f32 %v668, %v685
    %687 = vst [vmem:[#allocation7] sm:$0x3] %v686
    // Predicated region
    $region26: #{hypertensor_forward.1} parent=1 // pred_check
      _
    $region27: #{hypertensor_forward.1} parent=1 // pred_check_branch
      %689 = sbr.rel (0) target = $region29
    $region28: #{hypertensor_forward.1} parent=1 // pred_region
      %s691 = ssub.s32 32, 32
      %692 = vsyncadd [#allocation4], %s691
      %s694 = sshll.u32 [#allocation7], 4
      %s695 = int_to_ptr.vmem [resolvable:$true] %s694
      %697 = dma.vmem_to_hbm [thread:$0]  %s695, 32, %s4, [#allocation4]
    $region29: #{hypertensor_forward.1} parent=1 // pred_fallthru
      _
    // Predicated region
    $region30: #{hypertensor_forward.1} parent=1 // pred_check
      _
    $region31: #{hypertensor_forward.1} parent=1 // pred_check_branch
      %699 = sbr.rel (0) target = $region33
    $region32: #{hypertensor_forward.1} parent=1 // pred_region
      %700 = dma.done [#allocation4], 32
    $region33: #{hypertensor_forward.1} parent=1 // pred_fallthru
      _
    %701 = vsyncpa [#allocation3], 1
    %702 = vsyncpa [#allocation6], 1
    %703 = vsyncpa [#allocation4], 1

</llo_original>
